<compile_context>
chip_gen: v7x
topology: tpu7x:2x2x1
jax: 0.10.0
libtpu: 0.0.40
codegen_flags: <defaults>
</compile_context>

<pallas_src>
import functools

import jax
import jax.numpy as jnp
from jax import lax
from jax.experimental import pallas as pl
from jax.experimental.pallas import tpu as pltpu


_NEG_INF = -1e30  # Python float -> jaxpr literal (NOT a captured jnp constant)


def _round_up(x, m):
    return ((x + m - 1) // m) * m


def _normalize_rows_bf16(x):
    """torch.nn.functional.normalize (f32 math) then cast to bf16. Done ONCE."""
    x = x.astype(jnp.float32)
    ss = jnp.sum(x * x, axis=-1, keepdims=True)
    y = x * lax.rsqrt(jnp.maximum(ss, 1e-24))
    return y.astype(jnp.bfloat16)


def _ntxent_both_kernel(a1_ref, a2_ref, bt_ref, o_ref, *,
                        inv_t, tm, n_valid, npad, row_pad):
    """One anchor-row tile of both views vs. the resident reference matrix.

    a1_ref, a2_ref : (tm, d)        bf16, pre-normalized anchor tiles (z1 / z2)
    bt_ref         : (d, 2*npad)    bf16, pre-normalized, transposed [z1 | z2] refs
    o_ref          : (1, 8, 128)    f32, this tile's loss sum (broadcast scalar)
    """
    row0 = pl.program_id(0) * tm
    two_tm = 2 * tm
    ncols = 2 * npad

    # Stack the two anchor tiles -> one MXU-filling matmul (M = 2*tm).
    a = jnp.concatenate([a1_ref[...], a2_ref[...]], axis=0)          # (2tm, d)
    s = lax.dot_general(a, bt_ref[...],
                        dimension_numbers=(((1,), (0,)), ((), ())),
                        preferred_element_type=jnp.float32) * inv_t  # (2tm, 2npad)

    ridx = lax.broadcasted_iota(jnp.int32, (two_tm, 1), 0)
    col = lax.broadcasted_iota(jnp.int32, (two_tm, ncols), 1)
    in_v2 = ridx >= tm                               # bottom half = z2 anchors
    g = row0 + jnp.where(in_v2, ridx - tm, ridx)     # anchor index within its view
    self_col = jnp.where(in_v2, g + npad, g)         # same element  -> excluded
    pos_col = jnp.where(in_v2, g, g + npad)          # positive pair -> numerator

    # Fused mask: drop self-similarity and (statically) padded ref columns.
    keep = col != self_col
    if n_valid < npad:
        col_mod = jnp.where(col >= npad, col - npad, col)
        keep = keep & (col_mod < n_valid)
    s = jnp.where(keep, s, _NEG_INF)

    m = jnp.max(s, axis=-1, keepdims=True)                            # (2tm, 1)
    s_pos = jnp.sum(jnp.where(col == pos_col, s, 0.0),
                    axis=-1, keepdims=True)                           # (2tm, 1)
    denom = jnp.sum(jnp.exp(s - m), axis=-1, keepdims=True)           # (2tm, 1)
    losses = m + jnp.log(denom) - s_pos                               # (2tm, 1)

    if n_valid < row_pad:  # static: drop padded anchor rows from the sum
        losses = jnp.where(g < n_valid, losses, 0.0)

    o_ref[...] = jnp.broadcast_to(jnp.sum(losses), (1, 8, 128))


def _ntxent_single_kernel(a_ref, bt_ref, o_ref, *,
                          inv_t, tm, n_valid, npad, row_pad):
    """anchors = z1 tile, refs = z2 (resident). Positive of row i is ref i."""
    row0 = pl.program_id(0) * tm

    s = lax.dot_general(a_ref[...], bt_ref[...],
                        dimension_numbers=(((1,), (0,)), ((), ())),
                        preferred_element_type=jnp.float32) * inv_t   # (tm, npad)

    col = lax.broadcasted_iota(jnp.int32, (tm, npad), 1)
    g = row0 + lax.broadcasted_iota(jnp.int32, (tm, 1), 0)

    if n_valid < npad:
        s = jnp.where(col < n_valid, s, _NEG_INF)

    m = jnp.max(s, axis=-1, keepdims=True)
    s_pos = jnp.sum(jnp.where(col == g, s, 0.0), axis=-1, keepdims=True)
    denom = jnp.sum(jnp.exp(s - m), axis=-1, keepdims=True)
    losses = m + jnp.log(denom) - s_pos                               # (tm, 1)

    if n_valid < row_pad:
        losses = jnp.where(g < n_valid, losses, 0.0)

    o_ref[...] = jnp.broadcast_to(jnp.sum(losses), (1, 8, 128))


def _vmem_limit_bytes(*, tm, d, n_ref_cols, n_anchor_tiles):
    refs = d * n_ref_cols * 2 * 2                       # resident bf16 refs, 2 bufs
    anchors = n_anchor_tiles * tm * d * 2 * 2           # streamed bf16 tiles, 2 bufs
    m_eff = tm * n_anchor_tiles                         # stacked MXU M
    work = m_eff * n_ref_cols * 4 * 3                   # sim / mask / exp f32 slabs
    out = 2 * 8 * 128 * 4
    est = refs + anchors + work + out + (4 << 20)

    cap = 64 << 20                                      # safe fallback
    try:
        cap = int(pltpu.get_tpu_info().vmem_capacity_bytes * 0.85)
    except Exception:
        pass
    # TODO(synk): if est > cap, switch to flash-style ref-column tiling instead
    # of clamping (the clamp bounds the limit, not the actual footprint).
    return int(min(max(est, 32 << 20), cap))


@functools.partial(jax.jit, static_argnames=("temperature", "direction"))
def ntxent_loss(z1, z2, temperature=0.07, direction="both"):
    """JAX/Pallas equivalent of the PyTorch NTXentLoss module's forward."""
    assert direction in ("single", "both")
    n, d = z1.shape
    assert z2.shape == (n, d)
    inv_t = 1.0 / float(temperature)

    # Normalize ONCE (f32 math) and cast to bf16; these feed BOTH the streamed
    # anchor tiles and (transposed) the resident reference matrix.
    z1n = _normalize_rows_bf16(z1)
    z2n = _normalize_rows_bf16(z2)

    # Lane-dense reference padding, decoupled from the anchor row tile.
    npad = _round_up(max(n, 1), 128)
    if direction == "single":
        tm = 256 if n >= 256 else (128 if n >= 128 else _round_up(n, 8))
    else:
        tm = 128 if n >= 128 else _round_up(n, 8)  # effective MXU M = 2*tm
    row_pad = _round_up(n, tm)
    num_tiles = row_pad // tm

    def pad_rows(z, rows):
        return z if rows == n else jnp.pad(z, ((0, rows - n), (0, 0)))

    out_shape = jax.ShapeDtypeStruct((num_tiles, 8, 128), jnp.float32)
    out_spec = pl.BlockSpec((1, 8, 128), lambda i: (i, 0, 0))
    anchor_spec = pl.BlockSpec((tm, d), lambda i: (i, 0))

    if direction == "single":
        a = pad_rows(z1n, row_pad)
        bt = jnp.transpose(pad_rows(z2n, npad))                  # (d, npad)
        kernel = functools.partial(_ntxent_single_kernel, inv_t=inv_t, tm=tm,
                                   n_valid=n, npad=npad, row_pad=row_pad)
        n_ref_cols = npad
        n_anchor_tiles = 1
        operands = (a, bt)
        in_specs = [anchor_spec, pl.BlockSpec((d, npad), lambda i: (0, 0))]
        flops = 2 * row_pad * npad * d
        transc = row_pad * npad + 2 * row_pad
        bytes_acc = row_pad * d * 2 + d * npad * 2 + num_tiles * 8 * 128 * 4
        n_pos_pairs = n
    else:  # "both"
        a1 = pad_rows(z1n, row_pad)
        a2 = pad_rows(z2n, row_pad)
        bt = jnp.concatenate([jnp.transpose(pad_rows(z1n, npad)),
                              jnp.transpose(pad_rows(z2n, npad))],
                             axis=1)                             # (d, 2*npad)
        kernel = functools.partial(_ntxent_both_kernel, inv_t=inv_t, tm=tm,
                                   n_valid=n, npad=npad, row_pad=row_pad)
        n_ref_cols = 2 * npad
        n_anchor_tiles = 2
        operands = (a1, a2, bt)
        in_specs = [anchor_spec, anchor_spec,
                    pl.BlockSpec((d, 2 * npad), lambda i: (0, 0))]
        flops = 2 * (2 * row_pad) * (2 * npad) * d
        transc = (2 * row_pad) * (2 * npad) + 4 * row_pad
        bytes_acc = (2 * row_pad * d * 2 + d * 2 * npad * 2
                     + num_tiles * 8 * 128 * 4)
        n_pos_pairs = 2 * n

    partial_sums = pl.pallas_call(
        kernel,
        out_shape=out_shape,
        grid=(num_tiles,),
        in_specs=in_specs,
        out_specs=out_spec,
        compiler_params=pltpu.CompilerParams(
            dimension_semantics=("parallel",),
            vmem_limit_bytes=_vmem_limit_bytes(
                tm=tm, d=d, n_ref_cols=n_ref_cols,
                n_anchor_tiles=n_anchor_tiles)),
        cost_estimate=pl.CostEstimate(
            flops=int(flops), transcendentals=int(transc),
            bytes_accessed=int(bytes_acc)),
    )(*operands)

    # MeanReducer over all positive pairs (true count, not padded count).
    return jnp.sum(partial_sums[:, 0, 0]) / jnp.float32(n_pos_pairs)


if __name__ == "__main__":
    key = jax.random.PRNGKey(0)
    k1, k2 = jax.random.split(key)
    N, D = 8, 32
    z1 = jax.random.normal(k1, (N, D), dtype=jnp.float32)
    z2 = jax.random.normal(k2, (N, D), dtype=jnp.float32)

    loss_both = ntxent_loss(z1, z2, temperature=0.07, direction="both")
    loss_single = ntxent_loss(z1, z2, temperature=0.07, direction="single")
    jax.block_until_ready(loss_both)
    jax.block_until_ready(loss_single)

    print("KERNEL_OK")
</pallas_src>

<mosaic_0001>
module attributes {stable_mosaic.version = 11 : i64} {
  func.func @_ntxent_both_kernel(%arg0: i32, %arg1: memref<8x32xbf16, #tpu.memory_space<vmem>>, %arg2: memref<8x32xbf16, #tpu.memory_space<vmem>>, %arg3: memref<32x256xbf16, #tpu.memory_space<vmem>>, %arg4: memref<1x8x128xf32, #tpu.memory_space<vmem>>) attributes {dimension_semantics = [#tpu.dimension_semantics<parallel>], iteration_bounds = array<i64: 1>, scalar_prefetch = 0 : i64, scratch_operands = 0 : i64, tpu.core_type = #tpu.core_type<tc>, window_params = [{transform_indices = @transform_0, window_bounds = array<i64: 8, 32>}, {transform_indices = @transform_1, window_bounds = array<i64: 8, 32>}, {pipeline_mode = #tpu.pipeline_mode<synchronous>, transform_indices = @transform_2, window_bounds = array<i64: 32, 256>}, {transform_indices = @transform_3, window_bounds = array<i64: 1, 8, 128>}]} {
    %c8_i32 = arith.constant 8 : i32
    %0 = arith.muli %arg0, %c8_i32 : i32
    %c0 = arith.constant 0 : index
    %c0_0 = arith.constant 0 : index
    %1 = vector.load %arg1[%c0, %c0_0] : memref<8x32xbf16, #tpu.memory_space<vmem>>, vector<8x32xbf16>
    %c0_1 = arith.constant 0 : index
    %c0_2 = arith.constant 0 : index
    %2 = vector.load %arg2[%c0_1, %c0_2] : memref<8x32xbf16, #tpu.memory_space<vmem>>, vector<8x32xbf16>
    %3 = tpu.concatenate %1, %2 in 0 : vector<8x32xbf16>, vector<8x32xbf16> -> vector<16x32xbf16>
    %c0_3 = arith.constant 0 : index
    %c0_4 = arith.constant 0 : index
    %4 = vector.load %arg3[%c0_3, %c0_4] : memref<32x256xbf16, #tpu.memory_space<vmem>>, vector<32x256xbf16>
    %cst = arith.constant dense<0.000000e+00> : vector<16x256xf32>
    %5 = tpu.matmul %3, %4, %cst {dimension_numbers = #tpu.dot_dimension_numbers<[1], [0], [0], [1], [0, 0, 1, 1], [], []>} : vector<16x32xbf16>, vector<32x256xbf16>, vector<16x256xf32> -> vector<16x256xf32>
    %cst_5 = arith.constant 14.2857141 : f32
    %6 = vector.broadcast %cst_5 : f32 to vector<16x256xf32>
    %7 = arith.mulf %5, %6 : vector<16x256xf32>
    %8 = tpu.iota {dimensions = array<i32: 0>} : vector<16x1xi32>
    %9 = tpu.iota {dimensions = array<i32: 1>} : vector<16x256xi32>
    %c8_i32_6 = arith.constant 8 : i32
    %10 = vector.broadcast %c8_i32_6 : i32 to vector<16x1xi32>
    %11 = arith.cmpi sge, %8, %10 : vector<16x1xi32>
    %c8_i32_7 = arith.constant 8 : i32
    %12 = vector.broadcast %c8_i32_7 : i32 to vector<16x1xi32>
    %13 = arith.subi %8, %12 : vector<16x1xi32>
    %14 = arith.select %11, %13, %8 : vector<16x1xi1>, vector<16x1xi32>
    %15 = vector.broadcast %0 : i32 to vector<16x1xi32>
    %16 = arith.addi %15, %14 : vector<16x1xi32>
    %c128_i32 = arith.constant 128 : i32
    %17 = vector.broadcast %c128_i32 : i32 to vector<16x1xi32>
    %18 = arith.addi %16, %17 : vector<16x1xi32>
    %19 = arith.select %11, %18, %16 : vector<16x1xi1>, vector<16x1xi32>
    %c128_i32_8 = arith.constant 128 : i32
    %20 = vector.broadcast %c128_i32_8 : i32 to vector<16x1xi32>
    %21 = arith.addi %16, %20 : vector<16x1xi32>
    %22 = arith.select %11, %16, %21 : vector<16x1xi1>, vector<16x1xi32>
    %23 = vector.broadcast %19 : vector<16x1xi32> to vector<16x256xi32>
    %24 = arith.cmpi ne, %9, %23 : vector<16x256xi32>
    %c128_i32_9 = arith.constant 128 : i32
    %25 = vector.broadcast %c128_i32_9 : i32 to vector<16x256xi32>
    %26 = arith.cmpi sge, %9, %25 : vector<16x256xi32>
    %c128_i32_10 = arith.constant 128 : i32
    %27 = vector.broadcast %c128_i32_10 : i32 to vector<16x256xi32>
    %28 = arith.subi %9, %27 : vector<16x256xi32>
    %29 = arith.select %26, %28, %9 : vector<16x256xi1>, vector<16x256xi32>
    %c8_i32_11 = arith.constant 8 : i32
    %30 = vector.broadcast %c8_i32_11 : i32 to vector<16x256xi32>
    %31 = arith.cmpi slt, %29, %30 : vector<16x256xi32>
    %32 = arith.andi %24, %31 : vector<16x256xi1>
    %cst_12 = arith.constant -1.000000e+30 : f32
    %33 = vector.broadcast %cst_12 : f32 to vector<16x256xf32>
    %34 = arith.select %32, %7, %33 : vector<16x256xi1>, vector<16x256xf32>
    %cst_13 = arith.constant dense<0xFF800000> : vector<16xf32>
    %35 = vector.multi_reduction <maximumf>, %34, %cst_13 [1] : vector<16x256xf32> to vector<16xf32>
    %36 = vector.shape_cast %35 : vector<16xf32> to vector<16x1xf32>
    %37 = vector.broadcast %22 : vector<16x1xi32> to vector<16x256xi32>
    %38 = arith.cmpi eq, %9, %37 : vector<16x256xi32>
    %cst_14 = arith.constant 0.000000e+00 : f32
    %39 = vector.broadcast %cst_14 : f32 to vector<16x256xf32>
    %40 = arith.select %38, %34, %39 : vector<16x256xi1>, vector<16x256xf32>
    %cst_15 = arith.constant dense<0.000000e+00> : vector<16xf32>
    %41 = vector.multi_reduction <add>, %40, %cst_15 [1] : vector<16x256xf32> to vector<16xf32>
    %42 = vector.shape_cast %41 : vector<16xf32> to vector<16x1xf32>
    %43 = vector.broadcast %36 : vector<16x1xf32> to vector<16x256xf32>
    %44 = arith.subf %34, %43 : vector<16x256xf32>
    %45 = math.exp %44 : vector<16x256xf32>
    %cst_16 = arith.constant dense<0.000000e+00> : vector<16xf32>
    %46 = vector.multi_reduction <add>, %45, %cst_16 [1] : vector<16x256xf32> to vector<16xf32>
    %47 = vector.shape_cast %46 : vector<16xf32> to vector<16x1xf32>
    %48 = math.log %47 : vector<16x1xf32>
    %49 = arith.addf %36, %48 : vector<16x1xf32>
    %50 = arith.subf %49, %42 : vector<16x1xf32>
    %51 = vector.shape_cast %50 : vector<16x1xf32> to vector<1x16x1xf32>
    %cst_17 = arith.constant dense<0.000000e+00> : vector<1xf32>
    %52 = vector.multi_reduction <add>, %51, %cst_17 [1, 2] : vector<1x16x1xf32> to vector<1xf32>
    %53 = vector.shape_cast %52 : vector<1xf32> to vector<1x1x1xf32>
    %54 = vector.extract %53[0, 0, 0] : f32 from vector<1x1x1xf32>
    %55 = vector.broadcast %54 : f32 to vector<1x8x128xf32>
    %c0_18 = arith.constant 0 : index
    %c0_19 = arith.constant 0 : index
    %c0_20 = arith.constant 0 : index
    %56 = vector.load %arg4[%c0_18, %c0_19, %c0_20] : memref<1x8x128xf32, #tpu.memory_space<vmem>>, vector<1x8x128xf32>
    tpu.vector_store %arg4[%c0_18, %c0_19, %c0_20], %55 {strides = array<i32>} : memref<1x8x128xf32, #tpu.memory_space<vmem>>, vector<1x8x128xf32>,
    return
  }
  func.func @transform_0(%arg0: i32) -> (i32, i32) {
    %c0_i32 = arith.constant 0 : i32
    %c0_i32_0 = arith.constant 0 : i32
    return %arg0, %c0_i32 : i32, i32
  }
  func.func @transform_1(%arg0: i32) -> (i32, i32) {
    %c0_i32 = arith.constant 0 : i32
    %c0_i32_0 = arith.constant 0 : i32
    return %arg0, %c0_i32 : i32, i32
  }
  func.func @transform_2(%arg0: i32) -> (i32, i32) {
    %c0_i32 = arith.constant 0 : i32
    %c0_i32_0 = arith.constant 0 : i32
    %c0_i32_1 = arith.constant 0 : i32
    return %c0_i32, %c0_i32_0 : i32, i32
  }
  func.func @transform_3(%arg0: i32) -> (i32, i32, i32) {
    %c0_i32 = arith.constant 0 : i32
    %c0_i32_0 = arith.constant 0 : i32
    %c0_i32_1 = arith.constant 0 : i32
    return %arg0, %c0_i32, %c0_i32_0 : i32, i32, i32
  }
}

</mosaic_0001>

<llo_original>
// kernel: ntxent_loss.1
$region0: #{ntxent_loss.1}
  #allocation0 [shape = 'u32[]', space=smem, size = 0x4, offset = 0x4, fixed_abs, tag = 'smem constant byte address 0x4 - core index']
  #allocation1 [shape = 'u32[144,128]{1,0:T(1,128)}', space=vmem, size = 0x12000, scoped, tag = 'internal scratch']
  %s0 = inlined_call_operand.vmem [shape: bf16[8,32], index: 0, kind: input, shape index: {}]
  %s1 = inlined_call_operand.vmem [shape: bf16[8,32], index: 1, kind: input, shape index: {}]
  %s2 = inlined_call_operand.vmem [shape: bf16[32,256], index: 2, kind: input, shape index: {}]
  %s3 = inlined_call_operand.vmem [shape: f32[1,8,128], index: 3, kind: output, shape index: {}]
  %s4 = sld [smem:[#allocation0]]
  $region22: #{ntxent_loss.1} parent=0
    _
  %s6 = ssub.s32 1, %s4
  %s7 = scalar_select 0, %s6, %s4
  // Predicated region
  $region2: #{ntxent_loss.1} parent=0 // pred_check
    _
  $region3: #{ntxent_loss.1} parent=0 // pred_check_branch
    %9 = sbr.rel (0) target = $region5
  $region4: #{ntxent_loss.1} parent=0 // pred_region
    _
  $region5: #{ntxent_loss.1} parent=0 // pred_fallthru
    _
  // Predicated region
  $region6: #{ntxent_loss.1} parent=0 // pred_check
    _
  $region7: #{ntxent_loss.1} parent=0 // pred_check_branch
    %11 = sbr.rel (0) target = $region9
  $region8: #{ntxent_loss.1} parent=0 // pred_region
    _
  $region9: #{ntxent_loss.1} parent=0 // pred_fallthru
    _
  // Predicated region
  $region10: #{ntxent_loss.1} parent=0 // pred_check
    _
  $region11: #{ntxent_loss.1} parent=0 // pred_check_branch
    %13 = sbr.rel (0) target = $region13
  $region12: #{ntxent_loss.1} parent=0 // pred_region
    _
  $region13: #{ntxent_loss.1} parent=0 // pred_fallthru
    _
  %s15 = smul.u32 0, 8
  %v16 = vld [vmem:[%s0] sm:$0xf]
  %v17 = vld [vmem:[%s1] sm:$0xf]
  %v19 = vunpack.c.l.b16 %v17
  %v20 = vpack.c.b16 %v19, %v19
  %vm21 = vcmask 1043456
  %v24 = vsel %vm21, %v16, %v20
  %v25 = vld [vmem:[%s2] sm:$0xff]
  %v26 = vld [vmem:[%s2 + $0x8] sm:$0xff]
  %v27 = vld [vmem:[%s2 + $0x10] sm:$0xff]
  %v28 = vld [vmem:[%s2 + $0x18] sm:$0xff]
  %v33 = vunpack.c.l.b16 %v25
  %v34 = vunpack.c.h.b16 %v25
  %v35 = vunpack.c.l.b16 %v26
  %v36 = vunpack.c.h.b16 %v26
  %v37 = vunpack.c.l.b16 %v27
  %v38 = vunpack.c.h.b16 %v27
  %v39 = vunpack.c.l.b16 %v28
  %v40 = vunpack.c.h.b16 %v28
  %v41 = vpack.c.b16 %v35, %v33
  %v42 = vpack.c.b16 %v36, %v34
  %v43 = vpack.c.b16 %v39, %v37
  %v44 = vpack.c.b16 %v40, %v38
  %vm49 = vcmask 261120
  %v50 = vsel %vm49, %v24, 0
  %52 = vmatprep.subr.bf16.mxu0 %v42
  %53 = vmatpush1.bf16.msra.mxu0 %v41
  %54 = vmatprep.subr.bf16.mxu0 %v44
  %55 = vmatpush1.bf16.msra.mxu0 %v43
  %56 = vmatprep.subr.bf16.mxu0 0
  %57 = vmatpush1.bf16.msra.mxu0 0
  %58 = vmatprep.subr.bf16.mxu0 0
  %59 = vmatpush1.bf16.msra.mxu0 0
  %60 = vmatprep.subr.bf16.mxu0 0
  %61 = vmatpush1.bf16.msra.mxu0 0
  %62 = vmatprep.subr.bf16.mxu0 0
  %63 = vmatpush1.bf16.msra.mxu0 0
  %64 = vmatprep.subr.bf16.mxu0 0
  %65 = vmatpush1.bf16.msra.mxu0 0
  %66 = vmatprep.subr.bf16.mxu0 0
  %67 = vmatpush1.bf16.msra.mxu0 0
  %68 = vmatprep.subr.bf16.mxu0 0
  %69 = vmatpush1.bf16.msra.mxu0 0
  %70 = vmatprep.subr.bf16.mxu0 0
  %71 = vmatpush1.bf16.msra.mxu0 0
  %72 = vmatprep.subr.bf16.mxu0 0
  %73 = vmatpush1.bf16.msra.mxu0 0
  %74 = vmatprep.subr.bf16.mxu0 0
  %75 = vmatpush1.bf16.msra.mxu0 0
  %76 = vmatprep.subr.bf16.mxu0 0
  %77 = vmatpush1.bf16.msra.mxu0 0
  %78 = vmatprep.subr.bf16.mxu0 0
  %79 = vmatpush1.bf16.msra.mxu0 0
  %80 = vmatprep.subr.bf16.mxu0 0
  %81 = vmatpush1.bf16.msra.mxu0 0
  %82 = vmatprep.subr.bf16.mxu0 0
  %83 = vmatpush1.bf16.msra.mxu0 0
  %84 = vmatprep.mubr.bf16.mxu0 0
  %85 = vmatmul.mubr.bf16.gmra.mrb[0].mxu0 %v50
  %v86 = vpop.f32.mrb[0].mxu0
  %v87 = vadd.f32 0.0, %v86
  %v88 = vpop.f32.mrb[0].mxu0
  %v89 = vadd.f32 0.0, %v88
  %v90 = vpop.f32.mrb[0].mxu0
  %v91 = vadd.f32 0.0, %v90
  %v92 = vpop.f32.mrb[0].mxu0
  %v93 = vadd.f32 0.0, %v92
  %94 = vdwg.mxu0
  %v95 = vmul.f32 %v87, 14.285714
  %v96 = vmul.f32 %v89, 14.285714
  %v97 = vmul.f32 %v91, 14.285714
  %v98 = vmul.f32 %v93, 14.285714
  %v99 = vlaneseq
  %v100 = vshrl.u32 %v99, 7
  %v101 = vadd.s32 %v100, 8
  %v102 = vlaneseq
  %v103 = vand.u32 %v102, 127
  %v104 = vadd.s32 %v103, 128
  %vm105 = vcmp.ge.s32.totalorder %v100, 8
  %vm106 = vcmp.ge.s32.totalorder %v101, 8
  %v107 = vsub.s32 %v100, 8
  %v108 = vsel %vm105, %v107, %v100
  %v109 = vsel %vm106, %v100, %v101
  %v110 = vstv %s15
  %v111 = vadd.s32 %v110, %v108
  %v112 = vadd.s32 %v110, %v109
  %v113 = vadd.s32 %v111, 128
  %v114 = vadd.s32 %v112, 128
  %v115 = vsel %vm105, %v113, %v111
  %v116 = vsel %vm106, %v114, %v112
  %v117 = vsel %vm105, %v111, %v113
  %v118 = vsel %vm106, %v112, %v114
  %vm119 = vcmp.ne.s32.totalorder %v103, %v115
  %vm120 = vcmp.ne.s32.totalorder %v104, %v115
  %vm121 = vcmp.ne.s32.totalorder %v103, %v116
  %vm122 = vcmp.ne.s32.totalorder %v104, %v116
  %vm123 = vcmp.ge.s32.totalorder %v103, 128
  %vm124 = vcmp.ge.s32.totalorder %v104, 128
  %v125 = vsub.s32 %v103, 128
  %v126 = vsel %vm123, %v125, %v103
  %v127 = vsel %vm124, %v103, %v104
  %vm128 = vcmp.lt.s32.totalorder %v126, 8
  %vm129 = vcmp.lt.s32.totalorder %v127, 8
  %vm130 = vmand %vm119, %vm128
  %vm131 = vmand %vm120, %vm129
  %vm132 = vmand %vm121, %vm128
  %vm133 = vmand %vm122, %vm129
  %v134 = vsel %vm130, %v95, -1e+30
  %v135 = vsel %vm131, %v96, -1e+30
  %v136 = vsel %vm132, %v97, -1e+30
  %v137 = vsel %vm133, %v98, -1e+30
  %v138 = vmax.f32 %v134, %v135
  %139 = vmax.xlane.f32.xlu0 %v138
  %v140 = vpop.xlane.xlu0 %139
  %v141 = vmax.f32 %v136, %v137
  %142 = vmax.xlane.f32.xlu0 %v141
  %v143 = vpop.xlane.xlu0 %142
  %vm144 = vcmp.eq.s32.totalorder %v103, %v117
  %vm145 = vcmp.eq.s32.totalorder %v104, %v117
  %vm146 = vcmp.eq.s32.totalorder %v103, %v118
  %vm147 = vcmp.eq.s32.totalorder %v104, %v118
  %v148 = vsel %vm144, %v134, 0.0
  %v149 = vsel %vm145, %v135, 0.0
  %v150 = vsel %vm146, %v136, 0.0
  %v151 = vsel %vm147, %v137, 0.0
  %v152 = vadd.f32 %v148, %v149
  %153 = vadd.xlane.f32.xlu0 %v152
  %v154 = vpop.xlane.xlu0 %153
  %v155 = vadd.f32 %v150, %v151
  %156 = vadd.xlane.f32.xlu0 %v155
  %v157 = vpop.xlane.xlu0 %156
  %v158 = vsub.f32 %v134, %v140
  %v159 = vsub.f32 %v135, %v140
  %v160 = vsub.f32 %v136, %v143
  %v161 = vsub.f32 %v137, %v143
  %v162 = vmul.f32 %v158, 1.442695
  %v163 = vpow.pop %v162
  %v164 = vmul.f32 %v159, 1.442695
  %v165 = vpow.pop %v164
  %v166 = vmul.f32 %v160, 1.442695
  %v167 = vpow.pop %v166
  %v168 = vmul.f32 %v161, 1.442695
  %v169 = vpow.pop %v168
  %v170 = vadd.f32 %v163, %v165
  %171 = vadd.xlane.f32.xlu0 %v170
  %v172 = vpop.xlane.xlu0 %171
  %v173 = vadd.f32 %v167, %v169
  %174 = vadd.xlane.f32.xlu0 %v173
  %v175 = vpop.xlane.xlu0 %174
  %v176 = vlog2.pop %v172
  %v177 = vmul.f32 %v176, 0.6931472
  %v178 = vlog2.pop %v175
  %v179 = vmul.f32 %v178, 0.6931472
  %v180 = vadd.f32 %v140, %v177
  %v181 = vadd.f32 %v143, %v179
  %v182 = vsub.f32 %v180, %v154
  %v183 = vsub.f32 %v181, %v157
  %vm184 = vcmask 7168
  %v185 = vsel %vm184, %v182, 0.0
  %v186 = vsel %vm184, %v183, 0.0
  %v187 = vadd.f32 %v185, %v186
  %188 = vadd.xlane.f32.xlu0 %v187
  %v189 = vpop.xlane.xlu0 %188
  %v190 = vrot.slane %v189, 4
  %v191 = vadd.f32 %v189, %v190
  %v192 = vrot.slane %v191, 2
  %v193 = vadd.f32 %v191, %v192
  %v194 = vrot.slane %v193, 1
  %v195 = vadd.f32 %v193, %v194
  %s196 = vtos %v195
  %v197 = vstv %s196
  %198 = vst [vmem:[%s3] sm:$0xff] %v197
  // Predicated region
  $region14: #{ntxent_loss.1} parent=0 // pred_check
    _
  $region15: #{ntxent_loss.1} parent=0 // pred_check_branch
    %200 = sbr.rel (0) target = $region17
  $region16: #{ntxent_loss.1} parent=0 // pred_region
    _
  $region17: #{ntxent_loss.1} parent=0 // pred_fallthru
    _
  // Predicated region
  $region18: #{ntxent_loss.1} parent=0 // pred_check
    _
  $region19: #{ntxent_loss.1} parent=0 // pred_check_branch
    %202 = sbr.rel (0) target = $region21
  $region20: #{ntxent_loss.1} parent=0 // pred_region
    _
  $region21: #{ntxent_loss.1} parent=0 // pred_fallthru
    _

</llo_original>
